<compile_context>
chip_gen: v7x
topology: tpu7x:2x2x1
jax: 0.10.0
libtpu: 0.0.40
codegen_flags: <defaults>
</compile_context>

<pallas_src>
import math
import jax
import jax.numpy as jnp
from jax.experimental import pallas as pl
from jax.experimental.pallas import tpu as pltpu

EPS = 1e-5  # nn.LayerNorm default eps


def _round_up(x, m):
    return (x + m - 1) // m * m


def _layernorm(x, gamma, beta):
    mu = jnp.mean(x, axis=-1, keepdims=True)
    var = jnp.mean((x - mu) ** 2, axis=-1, keepdims=True)
    return (x - mu) * jax.lax.rsqrt(var + EPS) * gamma + beta


def attention_gating_kernel(sh_ref, ts_ref, vec_ref, w1_ref, w2_ref, wr_ref,
                            out_ref):
    x = sh_ref[...].astype(jnp.float32)   # (tile_b, D) shared features
    t = ts_ref[...].astype(jnp.float32)   # (tile_b, D) task-specific features

    vecs = vec_ref[...]                   # (8, D) packed f32 vectors
    ln1_g, ln1_b = vecs[0:1], vecs[1:2]
    b2, br = vecs[2:3], vecs[3:4]
    lnr_g, lnr_b = vecs[4:5], vecs[5:6]
    dh = w1_ref.shape[1]                  # static
    b1 = vecs[6:7, :dh]                   # b1 folded into the slab (row 6)

    # attention branch:
    #   LayerNorm -> Linear(D, D/2) -> GELU -> (Dropout=id) -> Linear(D/2, D) -> Sigmoid
    xn = _layernorm(x, ln1_g, ln1_b)
    h = jnp.dot(xn.astype(jnp.bfloat16), w1_ref[...],
                preferred_element_type=jnp.float32) + b1
    # exact erf-based GELU (matches nn.GELU() default numerics; tanh-approx
    # would move work to the idle EUP slot but diverges slightly).
    h = 0.5 * h * (1.0 + jax.lax.erf(h * (1.0 / math.sqrt(2.0))))
    # TODO(synk): Dropout(0.2) omitted -- identity in eval mode.
    a = jnp.dot(h.astype(jnp.bfloat16), w2_ref[...],
                preferred_element_type=jnp.float32) + b2
    a = jax.nn.sigmoid(a)

    # gating: x*a + t*(1-a) == t + a*(x - t)  (saves one VALU mul per element)
    g = t + a * (x - t)

    # residual branch: Linear(D, D) -> LayerNorm
    r = jnp.dot(g.astype(jnp.bfloat16), wr_ref[...],
                preferred_element_type=jnp.float32) + br
    r = _layernorm(r, lnr_g, lnr_b)

    out_ref[...] = (g + r).astype(out_ref.dtype)


# ----------------------------------------------------------------------------
# BlockSpec / VMEM budgeting helpers
# ----------------------------------------------------------------------------

_HAS_BUFFERED = hasattr(pl, "Buffered")


def _const_spec(shape):
    """Constants never change block index -> single-buffer when supported."""
    if _HAS_BUFFERED:
        try:
            return pl.BlockSpec(shape, lambda i: (0, 0),
                                pipeline_mode=pl.Buffered(1))
        except TypeError:  # older BlockSpec without pipeline_mode kwarg
            pass
    return pl.BlockSpec(shape, lambda i: (0, 0))


def _row_spec(shape):
    return pl.BlockSpec(shape, lambda i: (i, 0))


def _vmem_capacity_bytes():
    info_fn = getattr(pltpu, "get_tpu_info", None)
    if info_fn is not None:
        try:
            return int(info_fn().vmem_capacity_bytes)
        except Exception:
            pass
    return 64 * 1024 * 1024  # conservative (v7x per-TC)


def _vmem_footprint_bytes(tb, d, dh, io_bytes):
    """Rough VMEM footprint estimate for a given batch tile."""
    act = 3 * 2 * tb * d * io_bytes            # shared/task/out tiles, 2 buffers each
    weights = (d * dh + dh * d + d * d) * 2    # bf16 weights, single-buffered
    slab = 2 * 8 * d * 4                       # packed vector slab
    interm = 6 * tb * d * 4                    # f32 temporaries (x,t,xn,a,g,r,...)
    return act + weights + slab + interm


def _choose_tile_b(batch, d, dh, io_bytes, requested):
    cap = _vmem_capacity_bytes()
    budget = cap - 16 * 1024 * 1024            # Mosaic internal-scratch headroom
    # >=2 grid steps so both v7x TensorCores get work (when the batch allows).
    if batch > 8:
        tb = min(requested, _round_up(pl.cdiv(batch, 2), 8))
    else:
        tb = _round_up(batch, 8)
    tb = max(8, _round_up(tb, 8))
    while tb > 8 and _vmem_footprint_bytes(tb, d, dh, io_bytes) > budget:
        tb = max(8, _round_up(tb // 2, 8))
    return tb


def _vmem_limit_bytes(footprint):
    cap = _vmem_capacity_bytes()
    limit = max(footprint + 8 * 1024 * 1024, 32 * 1024 * 1024)
    return int(max(16 * 1024 * 1024, min(limit, cap - 16 * 1024 * 1024)))


# ----------------------------------------------------------------------------
# Public wrapper
# ----------------------------------------------------------------------------

def attention_gating(shared, task, params, *, tile_b=512, io_dtype=None):
    """shared, task: (B, D). params: dict from init_params. Returns (B, D).

    io_dtype: dtype used to stream activations through HBM (e.g. jnp.bfloat16
    to halve memory traffic in the mem-bound regime). Defaults to the input
    dtype (f32 keeps exact parity with the reference). Internal math is f32.
    """
    B, D = shared.shape
    assert task.shape == (B, D), (
        "feature dims must match (the PyTorch identity-projection branch is a no-op)")
    Dh = params["w1"].shape[1]
    # D should ideally be a multiple of 128 for lane-dense (unmasked) stores;
    # other D still works because the tile spans the full feature dim.

    io_dtype = jnp.dtype(io_dtype) if io_dtype is not None else shared.dtype
    io_bytes = jnp.dtype(io_dtype).itemsize

    tb = _choose_tile_b(B, D, Dh, io_bytes, tile_b)
    Bp = _round_up(B, tb)

    shared = shared.astype(io_dtype)
    task = task.astype(io_dtype)
    if Bp != B:  # pad ragged batches; padded rows sliced off on return
        shared = jnp.pad(shared, ((0, Bp - B), (0, 0)))
        task = jnp.pad(task, ((0, Bp - B), (0, 0)))

    footprint = _vmem_footprint_bytes(tb, D, Dh, io_bytes)

    call = pl.pallas_call(
        attention_gating_kernel,
        out_shape=jax.ShapeDtypeStruct((Bp, D), io_dtype),
        grid_spec=pltpu.PrefetchScalarGridSpec(
            num_scalar_prefetch=0,
            grid=(Bp // tb,),
            in_specs=[
                _row_spec((tb, D)),      # shared features tile
                _row_spec((tb, D)),      # task-specific features tile
                _const_spec((8, D)),     # packed ln1_g/ln1_b/b2/br/lnr_g/lnr_b/b1
                _const_spec((D, Dh)),    # w1 (in, out), bf16
                _const_spec((Dh, D)),    # w2 (in, out), bf16
                _const_spec((D, D)),     # wr (in, out), bf16
            ],
            out_specs=_row_spec((tb, D)),
        ),
        compiler_params=pltpu.CompilerParams(
            dimension_semantics=("parallel",),
            vmem_limit_bytes=_vmem_limit_bytes(footprint),
        ),
    )
    out = call(shared, task, params["vecs"], params["w1"], params["w2"],
               params["wr"])
    return out[:B] if Bp != B else out


def init_params(key, feature_dim):
    """Deterministic synthetic parameters matching the PyTorch module shapes.

    Also pre-packs the six (1, D) vectors + b1 into one (8, D) slab and casts
    weights to bf16 once, so the forward call does no per-call repacking.
    """
    D = feature_dim
    Dh = D // 2
    ks = jax.random.split(key, 6)
    s1 = 1.0 / math.sqrt(D)
    s2 = 1.0 / math.sqrt(Dh)
    u = jax.random.uniform
    p = {
        # nn.LayerNorm(D): gamma=1, beta=0
        "ln1_g": jnp.ones((1, D), jnp.float32),
        "ln1_b": jnp.zeros((1, D), jnp.float32),
        # nn.Linear weights stored transposed (in, out), bf16 for the MXU
        "w1": u(ks[0], (D, Dh), jnp.float32, -s1, s1).astype(jnp.bfloat16),
        "b1": u(ks[1], (1, Dh), jnp.float32, -s1, s1),
        "w2": u(ks[2], (Dh, D), jnp.float32, -s2, s2).astype(jnp.bfloat16),
        "b2": u(ks[3], (1, D), jnp.float32, -s2, s2),
        "wr": u(ks[4], (D, D), jnp.float32, -s1, s1).astype(jnp.bfloat16),
        "br": u(ks[5], (1, D), jnp.float32, -s1, s1),
        # residual nn.LayerNorm(D)
        "lnr_g": jnp.ones((1, D), jnp.float32),
        "lnr_b": jnp.zeros((1, D), jnp.float32),
    }
    b1_pad = jnp.pad(p["b1"], ((0, 0), (0, D - Dh)))
    p["vecs"] = jnp.concatenate(
        [p["ln1_g"], p["ln1_b"], p["b2"], p["br"],
         p["lnr_g"], p["lnr_b"], b1_pad, jnp.zeros((1, D), jnp.float32)],
        axis=0)
    return p


def _reference(shared, task, p, *, matmul_dtype=jnp.bfloat16):
    """Pure-JAX reference of the PyTorch forward (eval mode)."""
    def ln(x, g, b):
        mu = jnp.mean(x, -1, keepdims=True)
        var = jnp.mean((x - mu) ** 2, -1, keepdims=True)
        return (x - mu) * jax.lax.rsqrt(var + EPS) * g + b

    def mm(x, w):
        return jnp.dot(x.astype(matmul_dtype), w.astype(matmul_dtype),
                       preferred_element_type=jnp.float32)

    xn = ln(shared, p["ln1_g"], p["ln1_b"])
    h = mm(xn, p["w1"]) + p["b1"]
    h = 0.5 * h * (1.0 + jax.lax.erf(h / math.sqrt(2.0)))
    a = jax.nn.sigmoid(mm(h, p["w2"]) + p["b2"])
    g = shared * a + task * (1.0 - a)
    r = ln(mm(g, p["wr"]) + p["br"], p["lnr_g"], p["lnr_b"])
    return g + r


if __name__ == "__main__":
    key = jax.random.PRNGKey(0)
    B, D = 16, 256  # small demo; D multiple of 128 keeps lanes dense (Dh = 128)

    k1, k2, k3 = jax.random.split(key, 3)
    shared = jax.random.normal(k1, (B, D), jnp.float32)
    task = jax.random.normal(k2, (B, D), jnp.float32)
    params = init_params(k3, D)

    # At this tiny batch the tile chooser caps tile_b at ceil(B/2)=8 rows, so
    # the grid has 2 steps (exercises pipelining + both v7x TensorCores).
    out = attention_gating(shared, task, params)
    out = jax.block_until_ready(out)
    assert out.shape == (B, D)

    # Tight check against a reference doing the same bf16 matmuls (f32 accum).
    ref_bf16 = _reference(shared, task, params, matmul_dtype=jnp.bfloat16)
    assert jnp.allclose(out, ref_bf16, atol=2e-3, rtol=2e-3), (
        f"max err vs bf16 ref {jnp.max(jnp.abs(out - ref_bf16))}")

    # Loose check against f32-matmul reference (documents bf16 MXU precision).
    ref_f32 = _reference(shared, task, params, matmul_dtype=jnp.float32)
    assert jnp.allclose(out, ref_f32, atol=1e-1, rtol=5e-2), (
        f"max err vs f32 ref {jnp.max(jnp.abs(out - ref_f32))}")

    print("KERNEL_OK")
</pallas_src>

<mosaic_0001>
module attributes {stable_mosaic.version = 11 : i64} {
  func.func @attention_gating_kernel(%arg0: i32, %arg1: memref<8x256xf32, #tpu.memory_space<vmem>>, %arg2: memref<8x256xf32, #tpu.memory_space<vmem>>, %arg3: memref<8x256xf32, #tpu.memory_space<vmem>>, %arg4: memref<256x128xbf16, #tpu.memory_space<vmem>>, %arg5: memref<128x256xbf16, #tpu.memory_space<vmem>>, %arg6: memref<256x256xbf16, #tpu.memory_space<vmem>>, %arg7: memref<8x256xf32, #tpu.memory_space<vmem>>) attributes {dimension_semantics = [#tpu.dimension_semantics<parallel>], iteration_bounds = array<i64: 2>, scalar_prefetch = 0 : i64, scratch_operands = 0 : i64, tpu.core_type = #tpu.core_type<tc>, window_params = [{transform_indices = @transform_0, window_bounds = array<i64: 8, 256>}, {transform_indices = @transform_1, window_bounds = array<i64: 8, 256>}, {pipeline_mode = #tpu.pipeline_mode<synchronous>, transform_indices = @transform_2, window_bounds = array<i64: 8, 256>}, {pipeline_mode = #tpu.pipeline_mode<synchronous>, transform_indices = @transform_3, window_bounds = array<i64: 256, 128>}, {pipeline_mode = #tpu.pipeline_mode<synchronous>, transform_indices = @transform_4, window_bounds = array<i64: 128, 256>}, {pipeline_mode = #tpu.pipeline_mode<synchronous>, transform_indices = @transform_5, window_bounds = array<i64: 256, 256>}, {transform_indices = @transform_6, window_bounds = array<i64: 8, 256>}]} {
    %c0 = arith.constant 0 : index
    %c0_0 = arith.constant 0 : index
    %0 = vector.load %arg1[%c0, %c0_0] : memref<8x256xf32, #tpu.memory_space<vmem>>, vector<8x256xf32>
    %c0_1 = arith.constant 0 : index
    %c0_2 = arith.constant 0 : index
    %1 = vector.load %arg2[%c0_1, %c0_2] : memref<8x256xf32, #tpu.memory_space<vmem>>, vector<8x256xf32>
    %c0_3 = arith.constant 0 : index
    %c0_4 = arith.constant 0 : index
    %2 = vector.load %arg3[%c0_3, %c0_4] : memref<8x256xf32, #tpu.memory_space<vmem>>, vector<8x256xf32>
    %3 = vector.extract_strided_slice %2 {offsets = [0, 0], sizes = [1, 256], strides = [1, 1]} : vector<8x256xf32> to vector<1x256xf32>
    %4 = vector.extract_strided_slice %2 {offsets = [1, 0], sizes = [1, 256], strides = [1, 1]} : vector<8x256xf32> to vector<1x256xf32>
    %5 = vector.extract_strided_slice %2 {offsets = [2, 0], sizes = [1, 256], strides = [1, 1]} : vector<8x256xf32> to vector<1x256xf32>
    %6 = vector.extract_strided_slice %2 {offsets = [3, 0], sizes = [1, 256], strides = [1, 1]} : vector<8x256xf32> to vector<1x256xf32>
    %7 = vector.extract_strided_slice %2 {offsets = [4, 0], sizes = [1, 256], strides = [1, 1]} : vector<8x256xf32> to vector<1x256xf32>
    %8 = vector.extract_strided_slice %2 {offsets = [5, 0], sizes = [1, 256], strides = [1, 1]} : vector<8x256xf32> to vector<1x256xf32>
    %9 = vector.extract_strided_slice %2 {offsets = [6, 0], sizes = [1, 128], strides = [1, 1]} : vector<8x256xf32> to vector<1x128xf32>
    %cst = arith.constant dense<0.000000e+00> : vector<8xf32>
    %10 = vector.multi_reduction <add>, %0, %cst [1] : vector<8x256xf32> to vector<8xf32>
    %11 = vector.shape_cast %10 : vector<8xf32> to vector<8x1xf32>
    %cst_5 = arith.constant 2.560000e+02 : f32
    %12 = vector.broadcast %cst_5 : f32 to vector<8x1xf32>
    %13 = arith.divf %11, %12 : vector<8x1xf32>
    %14 = vector.broadcast %13 : vector<8x1xf32> to vector<8x256xf32>
    %15 = arith.subf %0, %14 : vector<8x256xf32>
    %16 = arith.mulf %15, %15 : vector<8x256xf32>
    %cst_6 = arith.constant dense<0.000000e+00> : vector<8xf32>
    %17 = vector.multi_reduction <add>, %16, %cst_6 [1] : vector<8x256xf32> to vector<8xf32>
    %18 = vector.shape_cast %17 : vector<8xf32> to vector<8x1xf32>
    %cst_7 = arith.constant 2.560000e+02 : f32
    %19 = vector.broadcast %cst_7 : f32 to vector<8x1xf32>
    %20 = arith.divf %18, %19 : vector<8x1xf32>
    %21 = vector.broadcast %13 : vector<8x1xf32> to vector<8x256xf32>
    %22 = arith.subf %0, %21 : vector<8x256xf32>
    %cst_8 = arith.constant 9.99999974E-6 : f32
    %23 = vector.broadcast %cst_8 : f32 to vector<8x1xf32>
    %24 = arith.addf %20, %23 : vector<8x1xf32>
    %25 = math.rsqrt %24 : vector<8x1xf32>
    %26 = vector.broadcast %25 : vector<8x1xf32> to vector<8x256xf32>
    %27 = arith.mulf %22, %26 : vector<8x256xf32>
    %28 = vector.broadcast %3 : vector<1x256xf32> to vector<8x256xf32>
    %29 = arith.mulf %27, %28 : vector<8x256xf32>
    %30 = vector.broadcast %4 : vector<1x256xf32> to vector<8x256xf32>
    %31 = arith.addf %29, %30 : vector<8x256xf32>
    %32 = arith.truncf %31 : vector<8x256xf32> to vector<8x256xbf16>
    %c0_9 = arith.constant 0 : index
    %c0_10 = arith.constant 0 : index
    %33 = vector.load %arg4[%c0_9, %c0_10] : memref<256x128xbf16, #tpu.memory_space<vmem>>, vector<256x128xbf16>
    %cst_11 = arith.constant dense<0.000000e+00> : vector<8x128xf32>
    %34 = tpu.matmul %32, %33, %cst_11 {dimension_numbers = #tpu.dot_dimension_numbers<[1], [0], [0], [1], [0, 0, 1, 1], [], []>} : vector<8x256xbf16>, vector<256x128xbf16>, vector<8x128xf32> -> vector<8x128xf32>
    %35 = vector.broadcast %9 : vector<1x128xf32> to vector<8x128xf32>
    %36 = arith.addf %34, %35 : vector<8x128xf32>
    %cst_12 = arith.constant 5.000000e-01 : f32
    %37 = vector.broadcast %cst_12 : f32 to vector<8x128xf32>
    %38 = arith.mulf %37, %36 : vector<8x128xf32>
    %cst_13 = arith.constant 0.707106769 : f32
    %39 = vector.broadcast %cst_13 : f32 to vector<8x128xf32>
    %40 = arith.mulf %36, %39 : vector<8x128xf32>
    %41 = math.erf %40 : vector<8x128xf32>
    %cst_14 = arith.constant 1.000000e+00 : f32
    %42 = vector.broadcast %cst_14 : f32 to vector<8x128xf32>
    %43 = arith.addf %42, %41 : vector<8x128xf32>
    %44 = arith.mulf %38, %43 : vector<8x128xf32>
    %45 = arith.truncf %44 : vector<8x128xf32> to vector<8x128xbf16>
    %c0_15 = arith.constant 0 : index
    %c0_16 = arith.constant 0 : index
    %46 = vector.load %arg5[%c0_15, %c0_16] : memref<128x256xbf16, #tpu.memory_space<vmem>>, vector<128x256xbf16>
    %cst_17 = arith.constant dense<0.000000e+00> : vector<8x256xf32>
    %47 = tpu.matmul %45, %46, %cst_17 {dimension_numbers = #tpu.dot_dimension_numbers<[1], [0], [0], [1], [0, 0, 1, 1], [], []>} : vector<8x128xbf16>, vector<128x256xbf16>, vector<8x256xf32> -> vector<8x256xf32>
    %48 = vector.broadcast %5 : vector<1x256xf32> to vector<8x256xf32>
    %49 = arith.addf %47, %48 : vector<8x256xf32>
    %50 = arith.negf %49 : vector<8x256xf32>
    %51 = math.exp %50 : vector<8x256xf32>
    %cst_18 = arith.constant 1.000000e+00 : f32
    %52 = vector.broadcast %cst_18 : f32 to vector<8x256xf32>
    %53 = arith.addf %52, %51 : vector<8x256xf32>
    %54 = arith.divf %52, %53 : vector<8x256xf32>
    %55 = arith.subf %0, %1 : vector<8x256xf32>
    %56 = arith.mulf %54, %55 : vector<8x256xf32>
    %57 = arith.addf %1, %56 : vector<8x256xf32>
    %58 = arith.truncf %57 : vector<8x256xf32> to vector<8x256xbf16>
    %c0_19 = arith.constant 0 : index
    %c0_20 = arith.constant 0 : index
    %59 = vector.load %arg6[%c0_19, %c0_20] : memref<256x256xbf16, #tpu.memory_space<vmem>>, vector<256x256xbf16>
    %cst_21 = arith.constant dense<0.000000e+00> : vector<8x256xf32>
    %60 = tpu.matmul %58, %59, %cst_21 {dimension_numbers = #tpu.dot_dimension_numbers<[1], [0], [0], [1], [0, 0, 1, 1], [], []>} : vector<8x256xbf16>, vector<256x256xbf16>, vector<8x256xf32> -> vector<8x256xf32>
    %61 = vector.broadcast %6 : vector<1x256xf32> to vector<8x256xf32>
    %62 = arith.addf %60, %61 : vector<8x256xf32>
    %cst_22 = arith.constant dense<0.000000e+00> : vector<8xf32>
    %63 = vector.multi_reduction <add>, %62, %cst_22 [1] : vector<8x256xf32> to vector<8xf32>
    %64 = vector.shape_cast %63 : vector<8xf32> to vector<8x1xf32>
    %cst_23 = arith.constant 2.560000e+02 : f32
    %65 = vector.broadcast %cst_23 : f32 to vector<8x1xf32>
    %66 = arith.divf %64, %65 : vector<8x1xf32>
    %67 = vector.broadcast %66 : vector<8x1xf32> to vector<8x256xf32>
    %68 = arith.subf %62, %67 : vector<8x256xf32>
    %69 = arith.mulf %68, %68 : vector<8x256xf32>
    %cst_24 = arith.constant dense<0.000000e+00> : vector<8xf32>
    %70 = vector.multi_reduction <add>, %69, %cst_24 [1] : vector<8x256xf32> to vector<8xf32>
    %71 = vector.shape_cast %70 : vector<8xf32> to vector<8x1xf32>
    %cst_25 = arith.constant 2.560000e+02 : f32
    %72 = vector.broadcast %cst_25 : f32 to vector<8x1xf32>
    %73 = arith.divf %71, %72 : vector<8x1xf32>
    %74 = vector.broadcast %66 : vector<8x1xf32> to vector<8x256xf32>
    %75 = arith.subf %62, %74 : vector<8x256xf32>
    %cst_26 = arith.constant 9.99999974E-6 : f32
    %76 = vector.broadcast %cst_26 : f32 to vector<8x1xf32>
    %77 = arith.addf %73, %76 : vector<8x1xf32>
    %78 = math.rsqrt %77 : vector<8x1xf32>
    %79 = vector.broadcast %78 : vector<8x1xf32> to vector<8x256xf32>
    %80 = arith.mulf %75, %79 : vector<8x256xf32>
    %81 = vector.broadcast %7 : vector<1x256xf32> to vector<8x256xf32>
    %82 = arith.mulf %80, %81 : vector<8x256xf32>
    %83 = vector.broadcast %8 : vector<1x256xf32> to vector<8x256xf32>
    %84 = arith.addf %82, %83 : vector<8x256xf32>
    %85 = arith.addf %57, %84 : vector<8x256xf32>
    %c0_27 = arith.constant 0 : index
    %c0_28 = arith.constant 0 : index
    %86 = vector.load %arg7[%c0_27, %c0_28] : memref<8x256xf32, #tpu.memory_space<vmem>>, vector<8x256xf32>
    tpu.vector_store %arg7[%c0_27, %c0_28], %85 {strides = array<i32>} : memref<8x256xf32, #tpu.memory_space<vmem>>, vector<8x256xf32>,
    return
  }
  func.func @transform_0(%arg0: i32) -> (i32, i32) {
    %c0_i32 = arith.constant 0 : i32
    %c0_i32_0 = arith.constant 0 : i32
    return %arg0, %c0_i32 : i32, i32
  }
  func.func @transform_1(%arg0: i32) -> (i32, i32) {
    %c0_i32 = arith.constant 0 : i32
    %c0_i32_0 = arith.constant 0 : i32
    return %arg0, %c0_i32 : i32, i32
  }
  func.func @transform_2(%arg0: i32) -> (i32, i32) {
    %c0_i32 = arith.constant 0 : i32
    %c0_i32_0 = arith.constant 0 : i32
    %c0_i32_1 = arith.constant 0 : i32
    return %c0_i32, %c0_i32_0 : i32, i32
  }
  func.func @transform_3(%arg0: i32) -> (i32, i32) {
    %c0_i32 = arith.constant 0 : i32
    %c0_i32_0 = arith.constant 0 : i32
    %c0_i32_1 = arith.constant 0 : i32
    return %c0_i32, %c0_i32_0 : i32, i32
  }
  func.func @transform_4(%arg0: i32) -> (i32, i32) {
    %c0_i32 = arith.constant 0 : i32
    %c0_i32_0 = arith.constant 0 : i32
    %c0_i32_1 = arith.constant 0 : i32
    return %c0_i32, %c0_i32_0 : i32, i32
  }
  func.func @transform_5(%arg0: i32) -> (i32, i32) {
    %c0_i32 = arith.constant 0 : i32
    %c0_i32_0 = arith.constant 0 : i32
    %c0_i32_1 = arith.constant 0 : i32
    return %c0_i32, %c0_i32_0 : i32, i32
  }
  func.func @transform_6(%arg0: i32) -> (i32, i32) {
    %c0_i32 = arith.constant 0 : i32
    %c0_i32_0 = arith.constant 0 : i32
    return %arg0, %c0_i32 : i32, i32
  }
}

</mosaic_0001>

<llo_original>
// kernel: tpu_custom_call.1
$region0: #{tpu_custom_call.1}
  #allocation0 [shape = 'u32[]', space=smem, size = 0x4, offset = 0x4, fixed_abs, tag = 'smem constant byte address 0x4 - core index']
  #allocation1 [shape = 'u32[144,128]{1,0:T(1,128)}', space=vmem, size = 0x12000, scoped, tag = 'internal scratch']
  %s0 = inlined_call_operand.hbm [shape: f32[16,256], index: 0, kind: input, shape index: {}]
  %s1 = inlined_call_operand.hbm [shape: f32[16,256], index: 1, kind: input, shape index: {}]
  %s2 = inlined_call_operand.hbm [shape: f32[8,256], index: 2, kind: input, shape index: {}]
  %s3 = inlined_call_operand.hbm [shape: bf16[256,128], index: 3, kind: input, shape index: {}]
  %s4 = inlined_call_operand.hbm [shape: bf16[128,256], index: 4, kind: input, shape index: {}]
  %s5 = inlined_call_operand.hbm [shape: bf16[256,256], index: 5, kind: input, shape index: {}]
  %s6 = inlined_call_operand.hbm [shape: f32[16,256], index: 6, kind: output, shape index: {}]
  %s7 = sld [smem:[#allocation0]]
  $region81: #{tpu_custom_call.1} parent=0
    _
  %s9 = ssub.s32 1, %s7
  %s10 = scalar_select 0, %s9, %s7
  $region1: #{tpu_custom_call.1} parent=0
    #allocation2 [shape = 'u8[16384]{0}', space=vmem, size = 0x4000, scoped, tag = 'input window, operand 0']
    #allocation3 [shape = 's32[2]{0}', space=sflag, size = 0x8, scoped, tag = 'scoped memory for tpu_custom_call.1']
    #allocation4 [shape = 's32[2]{0}', space=sflag, size = 0x8, scoped, tag = 'scoped memory for tpu_custom_call.1']
    #allocation5 [shape = 'u8[16384]{0}', space=vmem, size = 0x4000, scoped, tag = 'input window, operand 1']
    #allocation6 [shape = 's32[2]{0}', space=sflag, size = 0x8, scoped, tag = 'scoped memory for tpu_custom_call.1']
    #allocation7 [shape = 'u8[8192]{0}', space=vmem, size = 0x2000, scoped, tag = 'input window, operand 2, single buffered']
    #allocation8 [shape = 'u8[65536]{0}', space=vmem, size = 0x10000, scoped, tag = 'input window, operand 3, single buffered']
    #allocation9 [shape = 's32[1]{0}', space=sflag, size = 0x4, scoped, tag = 'scoped memory for tpu_custom_call.1']
    #allocation10 [shape = 'u8[65536]{0}', space=vmem, size = 0x10000, scoped, tag = 'input window, operand 4, single buffered']
    #allocation11 [shape = 'u8[131072]{0}', space=vmem, size = 0x20000, scoped, tag = 'input window, operand 5, single buffered']
    #allocation12 [shape = 's32[1]{0}', space=sflag, size = 0x4, scoped, tag = 'scoped memory for tpu_custom_call.1']
    #allocation13 [shape = 'u8[16384]{0}', space=vmem, size = 0x4000, scoped, tag = 'output window, operand 0']
    %11 = vsyncpa [#allocation3], 0
    %s12 = scalar_lea.sflag [#allocation3], 1
    %13 = vsyncpa %s12, 0
    %14 = vsyncpa [#allocation6], 0
    %s15 = scalar_lea.sflag [#allocation6], 1
    %16 = vsyncpa %s15, 0
    %17 = vsyncpa [#allocation9], 0
    %18 = vsyncpa [#allocation12], 0
    %19 = vsyncpa [#allocation4], 0
    %s20 = scalar_lea.sflag [#allocation4], 1
    %21 = vsyncpa %s20, 0
    loop: start=0, step=1, limit=4
    $region2: #{tpu_custom_call.1} parent=1 // loop_pre_header
      _
    $region3: #{tpu_custom_call.1} parent=1 // loop_header
      %s23 = sphi 0, %s27
      %p24 = scmp.ge.s32.totalorder %s23, 4
      %s33 = sphi 0, %s35
      %s36 = sphi 0, %s33
      %s37 = sphi 0, %s36
      %s53 = sphi 0, %s37
      %s59 = sphi 0, %s61
      %s62 = sphi 0, %s59
      %s63 = sphi 0, %s62
      %s79 = sphi 0, %s63
      %s83 = sphi 0, %s83
      %s85 = sphi 0, %s83
      %s86 = sphi 0, %s85
      %s100 = sphi 0, %s86
      %s104 = sphi 0, %s104
      %s106 = sphi 0, %s104
      %s107 = sphi 0, %s106
      %s121 = sphi 0, %s107
      %s125 = sphi 0, %s125
      %s127 = sphi 0, %s125
      %s128 = sphi 0, %s127
      %s142 = sphi 0, %s128
      %s146 = sphi 0, %s146
      %s148 = sphi 0, %s146
      %s149 = sphi 0, %s148
      %s163 = sphi 0, %s149
      %s169 = sphi 0, %s171
      %s172 = sphi 0, %s169
      %s173 = sphi 0, %s172
      %s189 = sphi 0, %s173
    $region4: #{tpu_custom_call.1} parent=1 // loop_header_branch
      %26 = sbr.rel (%p24) target = $region8
    $region5: #{tpu_custom_call.1} parent=1 // loop_body
      %s28 = ssub.s32 %s23, 1
      %s29 = ssub.s32 %s23, 2
      %s30 = sadd.s32 %s23, 1
      %s31 = ssub.s32 %s23, %s30
      %p32 = scmp.eq.s32.totalorder %s31, 0
      %s34 = sadd.s32 %s33, 1
      %s35 = scalar_select %p32, %s33, %s34
      %p38 = pneg %p32
      %p39 = scmp.eq.s32.totalorder %s23, 1
      %p40 = por %p38, %p39
      %p41 = scmp.ne.s32.totalorder %s33, %s36
      %p42 = scmp.eq.s32.totalorder %s23, 0
      %p43 = por %p41, %p42
      %p44 = scmp.ne.s32.totalorder %s33, %s36
      %p45 = scmp.eq.s32.totalorder %s28, 1
      %p46 = por %p44, %p45
      %p47 = scmp.ne.s32.totalorder %s36, %s37
      %p48 = scmp.eq.s32.totalorder %s28, 0
      %p49 = por %p47, %p48
      %p50 = scmp.ne.s32.totalorder %s36, %s37
      %p51 = scmp.eq.s32.totalorder %s29, 1
      %p52 = por %p50, %p51
      %p54 = scmp.ne.s32.totalorder %s37, %s53
      %p55 = scmp.eq.s32.totalorder %s29, 0
      %p56 = por %p54, %p55
      %s57 = ssub.s32 %s23, %s30
      %p58 = scmp.eq.s32.totalorder %s57, 0
      %s60 = sadd.s32 %s59, 1
      %s61 = scalar_select %p58, %s59, %s60
      %p64 = pneg %p58
      %p65 = scmp.eq.s32.totalorder %s23, 1
      %p66 = por %p64, %p65
      %p67 = scmp.ne.s32.totalorder %s59, %s62
      %p68 = scmp.eq.s32.totalorder %s23, 0
      %p69 = por %p67, %p68
      %p70 = scmp.ne.s32.totalorder %s59, %s62
      %p71 = scmp.eq.s32.totalorder %s28, 1
      %p72 = por %p70, %p71
      %p73 = scmp.ne.s32.totalorder %s62, %s63
      %p74 = scmp.eq.s32.totalorder %s28, 0
      %p75 = por %p73, %p74
      %p76 = scmp.ne.s32.totalorder %s62, %s63
      %p77 = scmp.eq.s32.totalorder %s29, 1
      %p78 = por %p76, %p77
      %p80 = scmp.ne.s32.totalorder %s63, %s79
      %p81 = scmp.eq.s32.totalorder %s29, 0
      %p82 = por %p80, %p81
      %s84 = sadd.s32 %s83, 1
      %p87 = scmp.eq.s32.totalorder %s23, 1
      %p88 = scmp.ne.s32.totalorder %s83, %s85
      %p89 = scmp.eq.s32.totalorder %s23, 0
      %p90 = por %p88, %p89
      %p91 = scmp.ne.s32.totalorder %s83, %s85
      %p92 = scmp.eq.s32.totalorder %s28, 1
      %p93 = por %p91, %p92
      %p94 = scmp.ne.s32.totalorder %s85, %s86
      %p95 = scmp.eq.s32.totalorder %s28, 0
      %p96 = por %p94, %p95
      %p97 = scmp.ne.s32.totalorder %s85, %s86
      %p98 = scmp.eq.s32.totalorder %s29, 1
      %p99 = por %p97, %p98
      %p101 = scmp.ne.s32.totalorder %s86, %s100
      %p102 = scmp.eq.s32.totalorder %s29, 0
      %p103 = por %p101, %p102
      %s105 = sadd.s32 %s104, 1
      %p108 = scmp.eq.s32.totalorder %s23, 1
      %p109 = scmp.ne.s32.totalorder %s104, %s106
      %p110 = scmp.eq.s32.totalorder %s23, 0
      %p111 = por %p109, %p110
      %p112 = scmp.ne.s32.totalorder %s104, %s106
      %p113 = scmp.eq.s32.totalorder %s28, 1
      %p114 = por %p112, %p113
      %p115 = scmp.ne.s32.totalorder %s106, %s107
      %p116 = scmp.eq.s32.totalorder %s28, 0
      %p117 = por %p115, %p116
      %p118 = scmp.ne.s32.totalorder %s106, %s107
      %p119 = scmp.eq.s32.totalorder %s29, 1
      %p120 = por %p118, %p119
      %p122 = scmp.ne.s32.totalorder %s107, %s121
      %p123 = scmp.eq.s32.totalorder %s29, 0
      %p124 = por %p122, %p123
      %s126 = sadd.s32 %s125, 1
      %p129 = scmp.eq.s32.totalorder %s23, 1
      %p130 = scmp.ne.s32.totalorder %s125, %s127
      %p131 = scmp.eq.s32.totalorder %s23, 0
      %p132 = por %p130, %p131
      %p133 = scmp.ne.s32.totalorder %s125, %s127
      %p134 = scmp.eq.s32.totalorder %s28, 1
      %p135 = por %p133, %p134
      %p136 = scmp.ne.s32.totalorder %s127, %s128
      %p137 = scmp.eq.s32.totalorder %s28, 0
      %p138 = por %p136, %p137
      %p139 = scmp.ne.s32.totalorder %s127, %s128
      %p140 = scmp.eq.s32.totalorder %s29, 1
      %p141 = por %p139, %p140
      %p143 = scmp.ne.s32.totalorder %s128, %s142
      %p144 = scmp.eq.s32.totalorder %s29, 0
      %p145 = por %p143, %p144
      %s147 = sadd.s32 %s146, 1
      %p150 = scmp.eq.s32.totalorder %s23, 1
      %p151 = scmp.ne.s32.totalorder %s146, %s148
      %p152 = scmp.eq.s32.totalorder %s23, 0
      %p153 = por %p151, %p152
      %p154 = scmp.ne.s32.totalorder %s146, %s148
      %p155 = scmp.eq.s32.totalorder %s28, 1
      %p156 = por %p154, %p155
      %p157 = scmp.ne.s32.totalorder %s148, %s149
      %p158 = scmp.eq.s32.totalorder %s28, 0
      %p159 = por %p157, %p158
      %p160 = scmp.ne.s32.totalorder %s148, %s149
      %p161 = scmp.eq.s32.totalorder %s29, 1
      %p162 = por %p160, %p161
      %p164 = scmp.ne.s32.totalorder %s149, %s163
      %p165 = scmp.eq.s32.totalorder %s29, 0
      %p166 = por %p164, %p165
      %s167 = ssub.s32 %s23, %s30
      %p168 = scmp.eq.s32.totalorder %s167, 0
      %s170 = sadd.s32 %s169, 1
      %s171 = scalar_select %p168, %s169, %s170
      %p174 = pneg %p168
      %p175 = scmp.eq.s32.totalorder %s23, 1
      %p176 = por %p174, %p175
      %p177 = scmp.ne.s32.totalorder %s169, %s172
      %p178 = scmp.eq.s32.totalorder %s23, 0
      %p179 = por %p177, %p178
      %p180 = scmp.ne.s32.totalorder %s169, %s172
      %p181 = scmp.eq.s32.totalorder %s28, 1
      %p182 = por %p180, %p181
      %p183 = scmp.ne.s32.totalorder %s172, %s173
      %p184 = scmp.eq.s32.totalorder %s28, 0
      %p185 = por %p183, %p184
      %p186 = scmp.ne.s32.totalorder %s172, %s173
      %p187 = scmp.eq.s32.totalorder %s29, 1
      %p188 = por %p186, %p187
      %p190 = scmp.ne.s32.totalorder %s173, %s189
      %p191 = scmp.eq.s32.totalorder %s29, 0
      %p192 = por %p190, %p191
      %p193 = scmp.le.s32.totalorder 1, %s23
      %p194 = scmp.lt.s32.totalorder %s23, 3
      %p195 = pnand %p193, %p194
      %p196 = pneg %p195
      // Predicated region
      $region9: #{tpu_custom_call.1} parent=5 // pred_check
        _
      $region10: #{tpu_custom_call.1} parent=5 // pred_check_branch
        %198 = sbr.rel (%p195) target = $region12
      $region11: #{tpu_custom_call.1} parent=5 // pred_region
        %s199 = ssub.s32 %s23, 1
        // Predicated region
        $region13: #{tpu_custom_call.1} parent=11 // pred_check
          %p200 = pneg %p96
        $region14: #{tpu_custom_call.1} parent=11 // pred_check_branch
          %202 = sbr.rel (%p200) target = $region16
        $region15: #{tpu_custom_call.1} parent=11 // pred_region
          %s204 = ssub.s32 256, 256
          %205 = vsyncadd [#allocation6], %s204
          %s207 = sshll.u32 [#allocation7], 4
          %s208 = int_to_ptr.vmem [resolvable:$true] %s207
          %210 = dma.hbm_to_vmem [thread:$0]  %s2, 256, %s208, [#allocation6]
        $region16: #{tpu_custom_call.1} parent=11 // pred_fallthru
          _
        // Predicated region
        $region17: #{tpu_custom_call.1} parent=11 // pred_check
          %p211 = pneg %p117
        $region18: #{tpu_custom_call.1} parent=11 // pred_check_branch
          %213 = sbr.rel (%p211) target = $region20
        $region19: #{tpu_custom_call.1} parent=11 // pred_region
          %s215 = ssub.s32 2048, 2048
          %216 = vsyncadd [#allocation9], %s215
          %s217 = sshll.u32 [#allocation8], 4
          %s218 = int_to_ptr.vmem [resolvable:$true] %s217
          %223 = dma.hbm_to_vmem [thread:$0]  %s3, 2048, %s218, [#allocation9], 64, 64, 4
        $region20: #{tpu_custom_call.1} parent=11 // pred_fallthru
          _
        // Predicated region
        $region21: #{tpu_custom_call.1} parent=11 // pred_check
          %p224 = pneg %p138
        $region22: #{tpu_custom_call.1} parent=11 // pred_check_branch
          %226 = sbr.rel (%p224) target = $region24
        $region23: #{tpu_custom_call.1} parent=11 // pred_region
          %s228 = ssub.s32 2048, 2048
          %229 = vsyncadd [#allocation9], %s228
          %s230 = sshll.u32 [#allocation10], 4
          %s231 = int_to_ptr.vmem [resolvable:$true] %s230
          %236 = dma.hbm_to_vmem [thread:$0]  %s4, 2048, %s231, [#allocation9], 128, 128, 8
        $region24: #{tpu_custom_call.1} parent=11 // pred_fallthru
          _
        // Predicated region
        $region25: #{tpu_custom_call.1} parent=11 // pred_check
          %p237 = pneg %p159
        $region26: #{tpu_custom_call.1} parent=11 // pred_check_branch
          %239 = sbr.rel (%p237) target = $region28
        $region27: #{tpu_custom_call.1} parent=11 // pred_region
          %s241 = ssub.s32 4096, 4096
          %242 = vsyncadd [#allocation12], %s241
          %s243 = sshll.u32 [#allocation11], 4
          %s244 = int_to_ptr.vmem [resolvable:$true] %s243
          %249 = dma.hbm_to_vmem [thread:$0]  %s5, 4096, %s244, [#allocation12], 128, 128, 8
        $region28: #{tpu_custom_call.1} parent=11 // pred_fallthru
          _
      $region12: #{tpu_custom_call.1} parent=5 // pred_fallthru
        _
      %p250 = scmp.lt.s32.totalorder %s23, 2
      // Predicated region
      $region29: #{tpu_custom_call.1} parent=5 // pred_check
        %p251 = pneg %p250
      $region30: #{tpu_custom_call.1} parent=5 // pred_check_branch
        %253 = sbr.rel (%p251) target = $region32
      $region31: #{tpu_custom_call.1} parent=5 // pred_region
        // Predicated region
        $region33: #{tpu_custom_call.1} parent=31 // pred_check
          %p254 = pneg %p43
        $region34: #{tpu_custom_call.1} parent=31 // pred_check_branch
          %256 = sbr.rel (%p254) target = $region36
        $region35: #{tpu_custom_call.1} parent=31 // pred_region
          %s257 = sand.u32 %s33, 1
          %s258 = scalar_lea.sflag [#allocation3], %s257
          %s259 = sand.u32 %s33, 1
          %s260 = smul.addr %s259, 16
          %s261 = scalar_lea.vmem [#allocation2], %s260
          %s263 = ssub.s32 256, 256
          %264 = vsyncadd %s258, %s263
          %s265 = smul.addr %s23, 2
          %s266 = smul.addr %s265, 128
          %s267 = scalar_lea.hbm %s0, %s266
          %s269 = sshll.u32 %s261, 4
          %s270 = int_to_ptr.vmem [resolvable:$true] %s269
          %272 = dma.hbm_to_vmem [thread:$0]  %s267, 256, %s270, %s258
        $region36: #{tpu_custom_call.1} parent=31 // pred_fallthru
          _
        // Predicated region
        $region37: #{tpu_custom_call.1} parent=31 // pred_check
          %p273 = pneg %p69
        $region38: #{tpu_custom_call.1} parent=31 // pred_check_branch
          %275 = sbr.rel (%p273) target = $region40
        $region39: #{tpu_custom_call.1} parent=31 // pred_region
          %s276 = sand.u32 %s23, 1
          %s277 = scalar_lea.sflag [#allocation6], %s276
          %s278 = sand.u32 %s59, 1
          %s279 = smul.addr %s278, 16
          %s280 = scalar_lea.vmem [#allocation5], %s279
          %s282 = ssub.s32 256, 256
          %283 = vsyncadd %s277, %s282
          %s284 = smul.addr %s23, 2
          %s285 = smul.addr %s284, 128
          %s286 = scalar_lea.hbm %s1, %s285
          %s288 = sshll.u32 %s280, 4
          %s289 = int_to_ptr.vmem [resolvable:$true] %s288
          %291 = dma.hbm_to_vmem [thread:$0]  %s286, 256, %s289, %s277
        $region40: #{tpu_custom_call.1} parent=31 // pred_fallthru
          _
      $region32: #{tpu_custom_call.1} parent=5 // pred_fallthru
        _
      %p292 = scmp.le.s32.totalorder 1, %s23
      %p293 = scmp.lt.s32.totalorder %s23, 3
      %p294 = pnand %p292, %p293
      %p295 = pneg %p294
      // Predicated region
      $region41: #{tpu_custom_call.1} parent=5 // pred_check
        _
      $region42: #{tpu_custom_call.1} parent=5 // pred_check_branch
        %297 = sbr.rel (%p294) target = $region44
      $region43: #{tpu_custom_call.1} parent=5 // pred_region
        %s298 = ssub.s32 %s23, 1
        %s299 = sand.u32 %s36, 1
        %s300 = scalar_lea.sflag [#allocation3], %s299
        %s301 = sand.u32 %s36, 1
        %s302 = smul.addr %s301, 16
        %s303 = scalar_lea.vmem [#allocation2], %s302
        // Predicated region
        $region45: #{tpu_custom_call.1} parent=43 // pred_check
          %p304 = pneg %p49
        $region46: #{tpu_custom_call.1} parent=43 // pred_check_branch
          %306 = sbr.rel (%p304) target = $region48
        $region47: #{tpu_custom_call.1} parent=43 // pred_region
          %307 = dma.done %s300, 256
        $region48: #{tpu_custom_call.1} parent=43 // pred_fallthru
          _
        %s308 = sand.u32 %s28, 1
        %s309 = scalar_lea.sflag [#allocation6], %s308
        %s310 = sand.u32 %s62, 1
        %s311 = smul.addr %s310, 16
        %s312 = scalar_lea.vmem [#allocation5], %s311
        // Predicated region
        $region49: #{tpu_custom_call.1} parent=43 // pred_check
          %p313 = pneg %p75
        $region50: #{tpu_custom_call.1} parent=43 // pred_check_branch
          %315 = sbr.rel (%p313) target = $region52
        $region51: #{tpu_custom_call.1} parent=43 // pred_region
          %316 = dma.done %s309, 256
        $region52: #{tpu_custom_call.1} parent=43 // pred_fallthru
          _
        // Predicated region
        $region53: #{tpu_custom_call.1} parent=43 // pred_check
          %p317 = pneg %p96
        $region54: #{tpu_custom_call.1} parent=43 // pred_check_branch
          %319 = sbr.rel (%p317) target = $region56
        $region55: #{tpu_custom_call.1} parent=43 // pred_region
          %320 = dma.done [#allocation6], 256
        $region56: #{tpu_custom_call.1} parent=43 // pred_fallthru
          _
        // Predicated region
        $region57: #{tpu_custom_call.1} parent=43 // pred_check
          %p321 = pneg %p117
        $region58: #{tpu_custom_call.1} parent=43 // pred_check_branch
          %323 = sbr.rel (%p321) target = $region60
        $region59: #{tpu_custom_call.1} parent=43 // pred_region
          %324 = dma.done [#allocation9], 2048
        $region60: #{tpu_custom_call.1} parent=43 // pred_fallthru
          _
        // Predicated region
        $region61: #{tpu_custom_call.1} parent=43 // pred_check
          %p325 = pneg %p138
        $region62: #{tpu_custom_call.1} parent=43 // pred_check_branch
          %327 = sbr.rel (%p325) target = $region64
        $region63: #{tpu_custom_call.1} parent=43 // pred_region
          %328 = dma.done [#allocation9], 2048
        $region64: #{tpu_custom_call.1} parent=43 // pred_fallthru
          _
        // Predicated region
        $region65: #{tpu_custom_call.1} parent=43 // pred_check
          %p329 = pneg %p159
        $region66: #{tpu_custom_call.1} parent=43 // pred_check_branch
          %331 = sbr.rel (%p329) target = $region68
        $region67: #{tpu_custom_call.1} parent=43 // pred_region
          %332 = dma.done [#allocation12], 4096
        $region68: #{tpu_custom_call.1} parent=43 // pred_fallthru
          _
        %s333 = sand.u32 %s36, 1
        %s334 = scalar_lea.sflag [#allocation3], %s333
        %s335 = sand.u32 %s36, 1
        %s336 = smul.addr %s335, 16
        %s337 = scalar_lea.vmem [#allocation2], %s336
        %p338 = pneg %p49
        %p339 = pneg %p46
        %s340 = sand.u32 %s28, 1
        %s341 = scalar_lea.sflag [#allocation6], %s340
        %s342 = sand.u32 %s62, 1
        %s343 = smul.addr %s342, 16
        %s344 = scalar_lea.vmem [#allocation5], %s343
        %p345 = pneg %p75
        %p346 = pneg %p72
        %p347 = pneg %p96
        %p348 = pneg %p93
        %p349 = pneg %p117
        %p350 = pneg %p114
        %p351 = pneg %p138
        %p352 = pneg %p135
        %p353 = pneg %p159
        %p354 = pneg %p156
        %p355 = pneg %p185
        %p356 = pneg %p182
        %s357 = sand.u32 %s172, 1
        %s358 = scalar_lea.sflag [#allocation4], %s357
        %s359 = sand.u32 %s172, 1
        %s360 = smul.addr %s359, 16
        %s361 = scalar_lea.vmem [#allocation13], %s360
        %v363 = vld [vmem:[%s303] sm:$0xff]
        %v364 = vld [vmem:[%s303 + $0x8] sm:$0xff]
        %v365 = vld [vmem:[%s312] sm:$0xff]
        %v366 = vld [vmem:[%s312 + $0x8] sm:$0xff]
        %v367 = vld [vmem:[#allocation7] sm:$0xff]
        %v368 = vld [vmem:[#allocation7 + $0x8] sm:$0xff]
        %v369 = vadd.f32 %v363, %v364
        %370 = vadd.xlane.f32.xlu0 %v369
        %v371 = vpop.xlane.xlu0 %370
        %v372 = vrcp.pop 256.0
        %v373 = vmul.f32 %v371, %v372
        %v374 = vsub.f32 %v363, %v373
        %v375 = vsub.f32 %v364, %v373
        %v376 = vmul.f32 %v374, %v374
        %v377 = vmul.f32 %v375, %v375
        %v378 = vadd.f32 %v376, %v377
        %379 = vadd.xlane.f32.xlu0 %v378
        %v380 = vpop.xlane.xlu0 %379
        %v381 = vmul.f32 %v380, %v372
        %v382 = vadd.f32 %v381, 1e-05
        %v383 = vrsqrt.pop %v382
        %v384 = vmul.f32 %v374, %v383
        %v385 = vmul.f32 %v375, %v383
        %v386 = vlaneseq
        %v387 = vshrl.u32 %v386, 7
        %v388 = vsub.s32 0, %v387
        %v389 = vrot.slane %v367, %v388
        %v390 = vlaneseq
        %v391 = vshrl.u32 %v390, 7
        %v392 = vsub.s32 0, %v391
        %v393 = vrot.slane %v368, %v392
        %v394 = vmul.f32 %v384, %v389
        %v395 = vmul.f32 %v385, %v393
        %v396 = vlaneseq
        %v397 = vshrl.u32 %v396, 7
        %v398 = vsub.s32 1, %v397
        %v399 = vrot.slane %v367, %v398
        %v400 = vlaneseq
        %v401 = vshrl.u32 %v400, 7
        %v402 = vsub.s32 1, %v401
        %v403 = vrot.slane %v368, %v402
        %v404 = vadd.f32 %v394, %v399
        %v405 = vadd.f32 %v395, %v403
        %v406 = vpack.c.bf16 %v404, %v404
        %v407 = vpack.c.bf16 %v405, %v405
        %v408 = vld [vmem:[#allocation8] sm:$0xf]
        %v409 = vld [vmem:[#allocation8 + $0x4] sm:$0xf]
        %v410 = vld [vmem:[#allocation8 + $0x8] sm:$0xf]
        %v411 = vld [vmem:[#allocation8 + $0xc] sm:$0xf]
        %v412 = vld [vmem:[#allocation8 + $0x10] sm:$0xf]
        %v413 = vld [vmem:[#allocation8 + $0x14] sm:$0xf]
        %v414 = vld [vmem:[#allocation8 + $0x18] sm:$0xf]
        %v415 = vld [vmem:[#allocation8 + $0x1c] sm:$0xf]
        %v416 = vld [vmem:[#allocation8 + $0x20] sm:$0xf]
        %v417 = vld [vmem:[#allocation8 + $0x24] sm:$0xf]
        %v418 = vld [vmem:[#allocation8 + $0x28] sm:$0xf]
        %v419 = vld [vmem:[#allocation8 + $0x2c] sm:$0xf]
        %v420 = vld [vmem:[#allocation8 + $0x30] sm:$0xf]
        %v421 = vld [vmem:[#allocation8 + $0x34] sm:$0xf]
        %v422 = vld [vmem:[#allocation8 + $0x38] sm:$0xf]
        %v423 = vld [vmem:[#allocation8 + $0x3c] sm:$0xf]
        %v424 = vld [vmem:[#allocation8 + $0x40] sm:$0xf]
        %v425 = vld [vmem:[#allocation8 + $0x44] sm:$0xf]
        %v426 = vld [vmem:[#allocation8 + $0x48] sm:$0xf]
        %v427 = vld [vmem:[#allocation8 + $0x4c] sm:$0xf]
        %v428 = vld [vmem:[#allocation8 + $0x50] sm:$0xf]
        %v429 = vld [vmem:[#allocation8 + $0x54] sm:$0xf]
        %v430 = vld [vmem:[#allocation8 + $0x58] sm:$0xf]
        %v431 = vld [vmem:[#allocation8 + $0x5c] sm:$0xf]
        %v432 = vld [vmem:[#allocation8 + $0x60] sm:$0xf]
        %v433 = vld [vmem:[#allocation8 + $0x64] sm:$0xf]
        %v434 = vld [vmem:[#allocation8 + $0x68] sm:$0xf]
        %v435 = vld [vmem:[#allocation8 + $0x6c] sm:$0xf]
        %v436 = vld [vmem:[#allocation8 + $0x70] sm:$0xf]
        %v437 = vld [vmem:[#allocation8 + $0x74] sm:$0xf]
        %v438 = vld [vmem:[#allocation8 + $0x78] sm:$0xf]
        %v439 = vld [vmem:[#allocation8 + $0x7c] sm:$0xf]
        %v440 = vlaneseq
        %v441 = vshrl.u32 %v440, 7
        %v442 = vsub.s32 6, %v441
        %v443 = vrot.slane %v367, %v442
        %v476 = vunpack.c.l.b16 %v408
        %v477 = vunpack.c.l.b16 %v409
        %v478 = vunpack.c.l.b16 %v410
        %v479 = vunpack.c.l.b16 %v411
        %v480 = vunpack.c.l.b16 %v412
        %v481 = vunpack.c.l.b16 %v413
        %v482 = vunpack.c.l.b16 %v414
        %v483 = vunpack.c.l.b16 %v415
        %v484 = vunpack.c.l.b16 %v416
        %v485 = vunpack.c.l.b16 %v417
        %v486 = vunpack.c.l.b16 %v418
        %v487 = vunpack.c.l.b16 %v419
        %v488 = vunpack.c.l.b16 %v420
        %v489 = vunpack.c.l.b16 %v421
        %v490 = vunpack.c.l.b16 %v422
        %v491 = vunpack.c.l.b16 %v423
        %v492 = vunpack.c.l.b16 %v424
        %v493 = vunpack.c.l.b16 %v425
        %v494 = vunpack.c.l.b16 %v426
        %v495 = vunpack.c.l.b16 %v427
        %v496 = vunpack.c.l.b16 %v428
        %v497 = vunpack.c.l.b16 %v429
        %v498 = vunpack.c.l.b16 %v430
        %v499 = vunpack.c.l.b16 %v431
        %v500 = vunpack.c.l.b16 %v432
        %v501 = vunpack.c.l.b16 %v433
        %v502 = vunpack.c.l.b16 %v434
        %v503 = vunpack.c.l.b16 %v435
        %v504 = vunpack.c.l.b16 %v436
        %v505 = vunpack.c.l.b16 %v437
        %v506 = vunpack.c.l.b16 %v438
        %v507 = vunpack.c.l.b16 %v439
        %v508 = vpack.c.b16 %v477, %v476
        %v509 = vpack.c.b16 %v479, %v478
        %v510 = vpack.c.b16 %v481, %v480
        %v511 = vpack.c.b16 %v483, %v482
        %v512 = vpack.c.b16 %v485, %v484
        %v513 = vpack.c.b16 %v487, %v486
        %v514 = vpack.c.b16 %v489, %v488
        %v515 = vpack.c.b16 %v491, %v490
        %v516 = vpack.c.b16 %v493, %v492
        %v517 = vpack.c.b16 %v495, %v494
        %v518 = vpack.c.b16 %v497, %v496
        %v519 = vpack.c.b16 %v499, %v498
        %v520 = vpack.c.b16 %v501, %v500
        %v521 = vpack.c.b16 %v503, %v502
        %v522 = vpack.c.b16 %v505, %v504
        %v523 = vpack.c.b16 %v507, %v506
        %540 = vmatprep.subr.bf16.mxu0 0
        %541 = vmatpush1.bf16.msra.mxu0 %v508
        %542 = vmatprep.subr.bf16.mxu0 0
        %543 = vmatpush1.bf16.msra.mxu0 %v509
        %544 = vmatprep.subr.bf16.mxu0 0
        %545 = vmatpush1.bf16.msra.mxu0 %v510
        %546 = vmatprep.subr.bf16.mxu0 0
        %547 = vmatpush1.bf16.msra.mxu0 %v511
        %548 = vmatprep.subr.bf16.mxu0 0
        %549 = vmatpush1.bf16.msra.mxu0 %v512
        %550 = vmatprep.subr.bf16.mxu0 0
        %551 = vmatpush1.bf16.msra.mxu0 %v513
        %552 = vmatprep.subr.bf16.mxu0 0
        %553 = vmatpush1.bf16.msra.mxu0 %v514
        %554 = vmatprep.subr.bf16.mxu0 0
        %555 = vmatpush1.bf16.msra.mxu0 %v515
        %556 = vmatprep.subr.bf16.mxu0 0
        %557 = vmatpush1.bf16.msra.mxu0 %v516
        %558 = vmatprep.subr.bf16.mxu0 0
        %559 = vmatpush1.bf16.msra.mxu0 %v517
        %560 = vmatprep.subr.bf16.mxu0 0
        %561 = vmatpush1.bf16.msra.mxu0 %v518
        %562 = vmatprep.subr.bf16.mxu0 0
        %563 = vmatpush1.bf16.msra.mxu0 %v519
        %564 = vmatprep.subr.bf16.mxu0 0
        %565 = vmatpush1.bf16.msra.mxu0 %v520
        %566 = vmatprep.subr.bf16.mxu0 0
        %567 = vmatpush1.bf16.msra.mxu0 %v521
        %568 = vmatprep.subr.bf16.mxu0 0
        %569 = vmatpush1.bf16.msra.mxu0 %v522
        %570 = vmatprep.subr.bf16.mxu0 0
        %571 = vmatpush1.bf16.msra.mxu0 %v523
        %572 = vmatprep.mubr.bf16.mxu0 %v407
        %573 = vmatmul.mubr.bf16.gmra.mrb[0].mxu0 %v406
        %v574 = vpop.f32.mrb[0].mxu0
        %v575 = vadd.f32 %v443, %v574
        %v576 = vpop.f32.mrb[0].mxu0
        %v577 = vpop.f32.mrb[0].mxu0
        %v578 = vpop.f32.mrb[0].mxu0
        %579 = vdwg.mxu0
        %v580 = vmul.f32 %v575, 0.5
        %v581 = vmul.f32 %v575, 0.70710677
        %v582 = verf.f32.pop %v581
        %v583 = vadd.f32 %v582, 1.0
        %v584 = vmul.f32 %v580, %v583
        %v585 = vpack.c.bf16 %v584, %v584
        %v586 = vld [vmem:[#allocation10] sm:$0xff]
        %v587 = vld [vmem:[#allocation10 + $0x8] sm:$0xff]
        %v588 = vld [vmem:[#allocation10 + $0x10] sm:$0xff]
        %v589 = vld [vmem:[#allocation10 + $0x18] sm:$0xff]
        %v590 = vld [vmem:[#allocation10 + $0x20] sm:$0xff]
        %v591 = vld [vmem:[#allocation10 + $0x28] sm:$0xff]
        %v592 = vld [vmem:[#allocation10 + $0x30] sm:$0xff]
        %v593 = vld [vmem:[#allocation10 + $0x38] sm:$0xff]
        %v594 = vld [vmem:[#allocation10 + $0x40] sm:$0xff]
        %v595 = vld [vmem:[#allocation10 + $0x48] sm:$0xff]
        %v596 = vld [vmem:[#allocation10 + $0x50] sm:$0xff]
        %v597 = vld [vmem:[#allocation10 + $0x58] sm:$0xff]
        %v598 = vld [vmem:[#allocation10 + $0x60] sm:$0xff]
        %v599 = vld [vmem:[#allocation10 + $0x68] sm:$0xff]
        %v600 = vld [vmem:[#allocation10 + $0x70] sm:$0xff]
        %v601 = vld [vmem:[#allocation10 + $0x78] sm:$0xff]
        %v602 = vlaneseq
        %v603 = vshrl.u32 %v602, 7
        %v604 = vsub.s32 2, %v603
        %v605 = vrot.slane %v367, %v604
        %v606 = vlaneseq
        %v607 = vshrl.u32 %v606, 7
        %v608 = vsub.s32 2, %v607
        %v609 = vrot.slane %v368, %v608
        %v626 = vunpack.c.l.b16 %v586
        %v627 = vunpack.c.h.b16 %v586
        %v628 = vunpack.c.l.b16 %v587
        %v629 = vunpack.c.h.b16 %v587
        %v630 = vunpack.c.l.b16 %v588
        %v631 = vunpack.c.h.b16 %v588
        %v632 = vunpack.c.l.b16 %v589
        %v633 = vunpack.c.h.b16 %v589
        %v634 = vunpack.c.l.b16 %v590
        %v635 = vunpack.c.h.b16 %v590
        %v636 = vunpack.c.l.b16 %v591
        %v637 = vunpack.c.h.b16 %v591
        %v638 = vunpack.c.l.b16 %v592
        %v639 = vunpack.c.h.b16 %v592
        %v640 = vunpack.c.l.b16 %v593
        %v641 = vunpack.c.h.b16 %v593
        %v642 = vunpack.c.l.b16 %v594
        %v643 = vunpack.c.h.b16 %v594
        %v644 = vunpack.c.l.b16 %v595
        %v645 = vunpack.c.h.b16 %v595
        %v646 = vunpack.c.l.b16 %v596
        %v647 = vunpack.c.h.b16 %v596
        %v648 = vunpack.c.l.b16 %v597
        %v649 = vunpack.c.h.b16 %v597
        %v650 = vunpack.c.l.b16 %v598
        %v651 = vunpack.c.h.b16 %v598
        %v652 = vunpack.c.l.b16 %v599
        %v653 = vunpack.c.h.b16 %v599
        %v654 = vunpack.c.l.b16 %v600
        %v655 = vunpack.c.h.b16 %v600
        %v656 = vunpack.c.l.b16 %v601
        %v657 = vunpack.c.h.b16 %v601
        %v658 = vpack.c.b16 %v628, %v626
        %v659 = vpack.c.b16 %v629, %v627
        %v660 = vpack.c.b16 %v632, %v630
        %v661 = vpack.c.b16 %v633, %v631
        %v662 = vpack.c.b16 %v636, %v634
        %v663 = vpack.c.b16 %v637, %v635
        %v664 = vpack.c.b16 %v640, %v638
        %v665 = vpack.c.b16 %v641, %v639
        %v666 = vpack.c.b16 %v644, %v642
        %v667 = vpack.c.b16 %v645, %v643
        %v668 = vpack.c.b16 %v648, %v646
        %v669 = vpack.c.b16 %v649, %v647
        %v670 = vpack.c.b16 %v652, %v650
        %v671 = vpack.c.b16 %v653, %v651
        %v672 = vpack.c.b16 %v656, %v654
        %v673 = vpack.c.b16 %v657, %v655
        %690 = vmatprep.subr.bf16.mxu0 %v659
        %691 = vmatpush1.bf16.msra.mxu0 %v658
        %692 = vmatprep.subr.bf16.mxu0 %v661
        %693 = vmatpush1.bf16.msra.mxu0 %v660
        %694 = vmatprep.subr.bf16.mxu0 %v663
        %695 = vmatpush1.bf16.msra.mxu0 %v662
        %696 = vmatprep.subr.bf16.mxu0 %v665
        %697 = vmatpush1.bf16.msra.mxu0 %v664
        %698 = vmatprep.subr.bf16.mxu0 %v667
        %699 = vmatpush1.bf16.msra.mxu0 %v666
        %700 = vmatprep.subr.bf16.mxu0 %v669
        %701 = vmatpush1.bf16.msra.mxu0 %v668
        %702 = vmatprep.subr.bf16.mxu0 %v671
        %703 = vmatpush1.bf16.msra.mxu0 %v670
        %704 = vmatprep.subr.bf16.mxu0 %v673
        %705 = vmatpush1.bf16.msra.mxu0 %v672
        %706 = vmatprep.subr.bf16.mxu0 0
        %707 = vmatpush1.bf16.msra.mxu0 0
        %708 = vmatprep.subr.bf16.mxu0 0
        %709 = vmatpush1.bf16.msra.mxu0 0
        %710 = vmatprep.subr.bf16.mxu0 0
        %711 = vmatpush1.bf16.msra.mxu0 0
        %712 = vmatprep.subr.bf16.mxu0 0
        %713 = vmatpush1.bf16.msra.mxu0 0
        %714 = vmatprep.subr.bf16.mxu0 0
        %715 = vmatpush1.bf16.msra.mxu0 0
        %716 = vmatprep.subr.bf16.mxu0 0
        %717 = vmatpush1.bf16.msra.mxu0 0
        %718 = vmatprep.subr.bf16.mxu0 0
        %719 = vmatpush1.bf16.msra.mxu0 0
        %720 = vmatprep.subr.bf16.mxu0 0
        %721 = vmatpush1.bf16.msra.mxu0 0
        %722 = vmatprep.mubr.bf16.mxu0 0
        %723 = vmatmul.mubr.bf16.gmra.mrb[0].mxu0 %v585
        %v724 = vpop.f32.mrb[0].mxu0
        %v725 = vadd.f32 %v605, %v724
        %v726 = vpop.f32.mrb[0].mxu0
        %v727 = vadd.f32 %v609, %v726
        %v728 = vpop.f32.mrb[0].mxu0
        %v729 = vpop.f32.mrb[0].mxu0
        %730 = vdwg.mxu0
        %v731 = vxor.u32 %v725, 2147483648
        %v732 = vxor.u32 %v727, 2147483648
        %v733 = vmul.f32 %v731, 1.442695
        %v734 = vpow.pop %v733
        %v735 = vmul.f32 %v732, 1.442695
        %v736 = vpow.pop %v735
        %v737 = vadd.f32 %v734, 1.0
        %v738 = vadd.f32 %v736, 1.0
        %v739 = vrcp.pop %v737
        %v740 = vmul.f32 1.0, %v739
        %v741 = vrcp.pop %v738
        %v742 = vmul.f32 1.0, %v741
        %v743 = vsub.f32 %v363, %v365
        %v744 = vsub.f32 %v364, %v366
        %v745 = vmul.f32 %v740, %v743
        %v746 = vmul.f32 %v742, %v744
        %v747 = vadd.f32 %v365, %v745
        %v748 = vadd.f32 %v366, %v746
        %v749 = vpack.c.bf16 %v747, %v747
        %v750 = vpack.c.bf16 %v748, %v748
        %v751 = vld [vmem:[#allocation11] sm:$0xff]
        %v752 = vld [vmem:[#allocation11 + $0x8] sm:$0xff]
        %v753 = vld [vmem:[#allocation11 + $0x10] sm:$0xff]
        %v754 = vld [vmem:[#allocation11 + $0x18] sm:$0xff]
        %v755 = vld [vmem:[#allocation11 + $0x20] sm:$0xff]
        %v756 = vld [vmem:[#allocation11 + $0x28] sm:$0xff]
        %v757 = vld [vmem:[#allocation11 + $0x30] sm:$0xff]
        %v758 = vld [vmem:[#allocation11 + $0x38] sm:$0xff]
        %v759 = vld [vmem:[#allocation11 + $0x40] sm:$0xff]
        %v760 = vld [vmem:[#allocation11 + $0x48] sm:$0xff]
        %v761 = vld [vmem:[#allocation11 + $0x50] sm:$0xff]
        %v762 = vld [vmem:[#allocation11 + $0x58] sm:$0xff]
        %v763 = vld [vmem:[#allocation11 + $0x60] sm:$0xff]
        %v764 = vld [vmem:[#allocation11 + $0x68] sm:$0xff]
        %v765 = vld [vmem:[#allocation11 + $0x70] sm:$0xff]
        %v766 = vld [vmem:[#allocation11 + $0x78] sm:$0xff]
        %v767 = vld [vmem:[#allocation11 + $0x80] sm:$0xff]
        %v768 = vld [vmem:[#allocation11 + $0x88] sm:$0xff]
        %v769 = vld [vmem:[#allocation11 + $0x90] sm:$0xff]
        %v770 = vld [vmem:[#allocation11 + $0x98] sm:$0xff]
        %v771 = vld [vmem:[#allocation11 + $0xa0] sm:$0xff]
        %v772 = vld [vmem:[#allocation11 + $0xa8] sm:$0xff]
        %v773 = vld [vmem:[#allocation11 + $0xb0] sm:$0xff]
        %v774 = vld [vmem:[#allocation11 + $0xb8] sm:$0xff]
        %v775 = vld [vmem:[#allocation11 + $0xc0] sm:$0xff]
        %v776 = vld [vmem:[#allocation11 + $0xc8] sm:$0xff]
        %v777 = vld [vmem:[#allocation11 + $0xd0] sm:$0xff]
        %v778 = vld [vmem:[#allocation11 + $0xd8] sm:$0xff]
        %v779 = vld [vmem:[#allocation11 + $0xe0] sm:$0xff]
        %v780 = vld [vmem:[#allocation11 + $0xe8] sm:$0xff]
        %v781 = vld [vmem:[#allocation11 + $0xf0] sm:$0xff]
        %v782 = vld [vmem:[#allocation11 + $0xf8] sm:$0xff]
        %v783 = vlaneseq
        %v784 = vshrl.u32 %v783, 7
        %v785 = vsub.s32 3, %v784
        %v786 = vrot.slane %v367, %v785
        %v787 = vlaneseq
        %v788 = vshrl.u32 %v787, 7
        %v789 = vsub.s32 3, %v788
        %v790 = vrot.slane %v368, %v789
        %v823 = vunpack.c.l.b16 %v751
        %v824 = vunpack.c.h.b16 %v751
        %v825 = vunpack.c.l.b16 %v752
        %v826 = vunpack.c.h.b16 %v752
        %v827 = vunpack.c.l.b16 %v753
        %v828 = vunpack.c.h.b16 %v753
        %v829 = vunpack.c.l.b16 %v754
        %v830 = vunpack.c.h.b16 %v754
        %v831 = vunpack.c.l.b16 %v755
        %v832 = vunpack.c.h.b16 %v755
        %v833 = vunpack.c.l.b16 %v756
        %v834 = vunpack.c.h.b16 %v756
        %v835 = vunpack.c.l.b16 %v757
        %v836 = vunpack.c.h.b16 %v757
        %v837 = vunpack.c.l.b16 %v758
        %v838 = vunpack.c.h.b16 %v758
        %v839 = vunpack.c.l.b16 %v759
        %v840 = vunpack.c.h.b16 %v759
        %v841 = vunpack.c.l.b16 %v760
        %v842 = vunpack.c.h.b16 %v760
        %v843 = vunpack.c.l.b16 %v761
        %v844 = vunpack.c.h.b16 %v761
        %v845 = vunpack.c.l.b16 %v762
        %v846 = vunpack.c.h.b16 %v762
        %v847 = vunpack.c.l.b16 %v763
        %v848 = vunpack.c.h.b16 %v763
        %v849 = vunpack.c.l.b16 %v764
        %v850 = vunpack.c.h.b16 %v764
        %v851 = vunpack.c.l.b16 %v765
        %v852 = vunpack.c.h.b16 %v765
        %v853 = vunpack.c.l.b16 %v766
        %v854 = vunpack.c.h.b16 %v766
        %v855 = vunpack.c.l.b16 %v767
        %v856 = vunpack.c.h.b16 %v767
        %v857 = vunpack.c.l.b16 %v768
        %v858 = vunpack.c.h.b16 %v768
        %v859 = vunpack.c.l.b16 %v769
        %v860 = vunpack.c.h.b16 %v769
        %v861 = vunpack.c.l.b16 %v770
        %v862 = vunpack.c.h.b16 %v770
        %v863 = vunpack.c.l.b16 %v771
        %v864 = vunpack.c.h.b16 %v771
        %v865 = vunpack.c.l.b16 %v772
        %v866 = vunpack.c.h.b16 %v772
        %v867 = vunpack.c.l.b16 %v773
        %v868 = vunpack.c.h.b16 %v773
        %v869 = vunpack.c.l.b16 %v774
        %v870 = vunpack.c.h.b16 %v774
        %v871 = vunpack.c.l.b16 %v775
        %v872 = vunpack.c.h.b16 %v775
        %v873 = vunpack.c.l.b16 %v776
        %v874 = vunpack.c.h.b16 %v776
        %v875 = vunpack.c.l.b16 %v777
        %v876 = vunpack.c.h.b16 %v777
        %v877 = vunpack.c.l.b16 %v778
        %v878 = vunpack.c.h.b16 %v778
        %v879 = vunpack.c.l.b16 %v779
        %v880 = vunpack.c.h.b16 %v779
        %v881 = vunpack.c.l.b16 %v780
        %v882 = vunpack.c.h.b16 %v780
        %v883 = vunpack.c.l.b16 %v781
        %v884 = vunpack.c.h.b16 %v781
        %v885 = vunpack.c.l.b16 %v782
        %v886 = vunpack.c.h.b16 %v782
        %v887 = vpack.c.b16 %v825, %v823
        %v888 = vpack.c.b16 %v826, %v824
        %v889 = vpack.c.b16 %v829, %v827
        %v890 = vpack.c.b16 %v830, %v828
        %v891 = vpack.c.b16 %v833, %v831
        %v892 = vpack.c.b16 %v834, %v832
        %v893 = vpack.c.b16 %v837, %v835
        %v894 = vpack.c.b16 %v838, %v836
        %v895 = vpack.c.b16 %v841, %v839
        %v896 = vpack.c.b16 %v842, %v840
        %v897 = vpack.c.b16 %v845, %v843
        %v898 = vpack.c.b16 %v846, %v844
        %v899 = vpack.c.b16 %v849, %v847
        %v900 = vpack.c.b16 %v850, %v848
        %v901 = vpack.c.b16 %v853, %v851
        %v902 = vpack.c.b16 %v854, %v852
        %v903 = vpack.c.b16 %v857, %v855
        %v904 = vpack.c.b16 %v858, %v856
        %v905 = vpack.c.b16 %v861, %v859
        %v906 = vpack.c.b16 %v862, %v860
        %v907 = vpack.c.b16 %v865, %v863
        %v908 = vpack.c.b16 %v866, %v864
        %v909 = vpack.c.b16 %v869, %v867
        %v910 = vpack.c.b16 %v870, %v868
        %v911 = vpack.c.b16 %v873, %v871
        %v912 = vpack.c.b16 %v874, %v872
        %v913 = vpack.c.b16 %v877, %v875
        %v914 = vpack.c.b16 %v878, %v876
        %v915 = vpack.c.b16 %v881, %v879
        %v916 = vpack.c.b16 %v882, %v880
        %v917 = vpack.c.b16 %v885, %v883
        %v918 = vpack.c.b16 %v886, %v884
        %951 = vmatprep.subr.bf16.mxu0 %v888
        %952 = vmatpush1.bf16.msra.mxu0 %v887
        %953 = vmatprep.subr.bf16.mxu0 %v890
        %954 = vmatpush1.bf16.msra.mxu0 %v889
        %955 = vmatprep.subr.bf16.mxu0 %v892
        %956 = vmatpush1.bf16.msra.mxu0 %v891
        %957 = vmatprep.subr.bf16.mxu0 %v894
        %958 = vmatpush1.bf16.msra.mxu0 %v893
        %959 = vmatprep.subr.bf16.mxu0 %v896
        %960 = vmatpush1.bf16.msra.mxu0 %v895
        %961 = vmatprep.subr.bf16.mxu0 %v898
        %962 = vmatpush1.bf16.msra.mxu0 %v897
        %963 = vmatprep.subr.bf16.mxu0 %v900
        %964 = vmatpush1.bf16.msra.mxu0 %v899
        %965 = vmatprep.subr.bf16.mxu0 %v902
        %966 = vmatpush1.bf16.msra.mxu0 %v901
        %967 = vmatprep.subr.bf16.mxu0 %v904
        %968 = vmatpush1.bf16.msra.mxu0 %v903
        %969 = vmatprep.subr.bf16.mxu0 %v906
        %970 = vmatpush1.bf16.msra.mxu0 %v905
        %971 = vmatprep.subr.bf16.mxu0 %v908
        %972 = vmatpush1.bf16.msra.mxu0 %v907
        %973 = vmatprep.subr.bf16.mxu0 %v910
        %974 = vmatpush1.bf16.msra.mxu0 %v909
        %975 = vmatprep.subr.bf16.mxu0 %v912
        %976 = vmatpush1.bf16.msra.mxu0 %v911
        %977 = vmatprep.subr.bf16.mxu0 %v914
        %978 = vmatpush1.bf16.msra.mxu0 %v913
        %979 = vmatprep.subr.bf16.mxu0 %v916
        %980 = vmatpush1.bf16.msra.mxu0 %v915
        %981 = vmatprep.subr.bf16.mxu0 %v918
        %982 = vmatpush1.bf16.msra.mxu0 %v917
        %983 = vmatprep.mubr.bf16.mxu0 %v750
        %984 = vmatmul.mubr.bf16.gmra.mrb[0].mxu0 %v749
        %v985 = vpop.f32.mrb[0].mxu0
        %v986 = vadd.f32 %v786, %v985
        %v987 = vpop.f32.mrb[0].mxu0
        %v988 = vadd.f32 %v790, %v987
        %v989 = vpop.f32.mrb[0].mxu0
        %v990 = vpop.f32.mrb[0].mxu0
        %991 = vdwg.mxu0
        %v992 = vadd.f32 %v986, %v988
        %993 = vadd.xlane.f32.xlu0 %v992
        %v994 = vpop.xlane.xlu0 %993
        %v995 = vmul.f32 %v994, %v372
        %v996 = vsub.f32 %v986, %v995
        %v997 = vsub.f32 %v988, %v995
        %v998 = vmul.f32 %v996, %v996
        %v999 = vmul.f32 %v997, %v997
        %v1000 = vadd.f32 %v998, %v999
        %1001 = vadd.xlane.f32.xlu0 %v1000
        %v1002 = vpop.xlane.xlu0 %1001
        %v1003 = vmul.f32 %v1002, %v372
        %v1004 = vadd.f32 %v1003, 1e-05
        %v1005 = vrsqrt.pop %v1004
        %v1006 = vmul.f32 %v996, %v1005
        %v1007 = vmul.f32 %v997, %v1005
        %v1008 = vlaneseq
        %v1009 = vshrl.u32 %v1008, 7
        %v1010 = vsub.s32 4, %v1009
        %v1011 = vrot.slane %v367, %v1010
        %v1012 = vlaneseq
        %v1013 = vshrl.u32 %v1012, 7
        %v1014 = vsub.s32 4, %v1013
        %v1015 = vrot.slane %v368, %v1014
        %v1016 = vmul.f32 %v1006, %v1011
        %v1017 = vmul.f32 %v1007, %v1015
        %v1018 = vlaneseq
        %v1019 = vshrl.u32 %v1018, 7
        %v1020 = vsub.s32 5, %v1019
        %v1021 = vrot.slane %v367, %v1020
        %v1022 = vlaneseq
        %v1023 = vshrl.u32 %v1022, 7
        %v1024 = vsub.s32 5, %v1023
        %v1025 = vrot.slane %v368, %v1024
        %v1026 = vadd.f32 %v1016, %v1021
        %v1027 = vadd.f32 %v1017, %v1025
        %v1028 = vadd.f32 %v747, %v1026
        %v1029 = vadd.f32 %v748, %v1027
        %1030 = vst [vmem:[%s361] sm:$0xff] %v1028
        %1031 = vst [vmem:[%s361 + $0x8] sm:$0xff] %v1029
        %s1032 = sand.u32 %s172, 1
        %s1033 = scalar_lea.sflag [#allocation4], %s1032
        %s1034 = sand.u32 %s172, 1
        %s1035 = smul.addr %s1034, 16
        %s1036 = scalar_lea.vmem [#allocation13], %s1035
        // Predicated region
        $region69: #{tpu_custom_call.1} parent=43 // pred_check
          %p1037 = pneg %p182
        $region70: #{tpu_custom_call.1} parent=43 // pred_check_branch
          %1039 = sbr.rel (%p1037) target = $region72
        $region71: #{tpu_custom_call.1} parent=43 // pred_region
          %s1041 = ssub.s32 256, 256
          %1042 = vsyncadd %s1033, %s1041
          %s1043 = smul.addr %s28, 2
          %s1044 = smul.addr %s1043, 128
          %s1045 = scalar_lea.hbm %s6, %s1044
          %s1047 = sshll.u32 %s1036, 4
          %s1048 = int_to_ptr.vmem [resolvable:$true] %s1047
          %1050 = dma.vmem_to_hbm [thread:$0]  %s1048, 256, %s1045, %s1033
        $region72: #{tpu_custom_call.1} parent=43 // pred_fallthru
          _
      $region44: #{tpu_custom_call.1} parent=5 // pred_fallthru
        _
      %p1051 = scmp.le.s32.totalorder 2, %s23
      // Predicated region
      $region73: #{tpu_custom_call.1} parent=5 // pred_check
        %p1052 = pneg %p1051
      $region74: #{tpu_custom_call.1} parent=5 // pred_check_branch
        %1054 = sbr.rel (%p1052) target = $region76
      $region75: #{tpu_custom_call.1} parent=5 // pred_region
        %s1055 = ssub.s32 %s23, 2
        // Predicated region
        $region77: #{tpu_custom_call.1} parent=75 // pred_check
          %p1056 = pneg %p188
        $region78: #{tpu_custom_call.1} parent=75 // pred_check_branch
          %1058 = sbr.rel (%p1056) target = $region80
        $region79: #{tpu_custom_call.1} parent=75 // pred_region
          %s1059 = sand.u32 %s173, 1
          %s1060 = scalar_lea.sflag [#allocation4], %s1059
          %s1061 = sand.u32 %s173, 1
          %s1062 = smul.addr %s1061, 16
          %s1063 = scalar_lea.vmem [#allocation13], %s1062
          %1064 = dma.done %s1060, 256
        $region80: #{tpu_custom_call.1} parent=75 // pred_fallthru
          _
      $region76: #{tpu_custom_call.1} parent=5 // pred_fallthru
        _
    $region6: #{tpu_custom_call.1} parent=1 // loop_footer
      %s27 = sadd.s32 1, %s23
    $region7: #{tpu_custom_call.1} parent=1 // loop_footer_branch
      %22 = sbr.rel target = $region3
    $region8: #{tpu_custom_call.1} parent=1 // loop_exit
      _
    %1065 = vsyncpa [#allocation3], 1
    %s1066 = scalar_lea.sflag [#allocation3], 1
    %1067 = vsyncpa %s1066, 1
    %1068 = vsyncpa [#allocation6], 1
    %s1069 = scalar_lea.sflag [#allocation6], 1
    %1070 = vsyncpa %s1069, 1
    %1071 = vsyncpa [#allocation9], 1
    %1072 = vsyncpa [#allocation12], 1
    %1073 = vsyncpa [#allocation4], 1
    %s1074 = scalar_lea.sflag [#allocation4], 1
    %1075 = vsyncpa %s1074, 1

</llo_original>
